<compile_context>
chip_gen: v7x
topology: tpu7x:2x2x1
jax: 0.10.0
libtpu: 0.0.40
codegen_flags: <defaults>
</compile_context>

<pallas_src>
import jax
import jax.numpy as jnp
from jax.experimental import pallas as pl
from jax.experimental.pallas import tpu as pltpu


def _blend_kernel(a_ref, b_ref, c_ref, o_ref):
    # out = a*c + b*(1-c) == b + c*(a-b): 1 sub + 1 mul + 1 add per element.
    a = a_ref[...]
    b = b_ref[...]
    o_ref[...] = b + c_ref[...] * (a - b)


def _round_up(x, m):
    return (x + m - 1) // m * m


_WIDTH_CANDIDATES = (4096, 2048, 1024, 512, 256, 128)


def _pick_width(n):
    """Largest 128-multiple width that divides n (free reshape, no padding)."""
    for w in _WIDTH_CANDIDATES:
        if n % w == 0:
            return w
    return 128  # fall back: pad by < 128 elements


def _tpu_generation():
    try:
        kind = jax.devices()[0].device_kind.lower()
    except Exception:
        return 0
    if "v7" in kind or "7x" in kind:
        return 7
    for v in (6, 5, 4):
        if f"v{v}" in kind:
            return v
    return 0


def blending_forward(a, b, c, *, force_pallas=False):
    """Mirror of BlendingModule.forward: a*c + b*(1-c), with broadcasting."""
    out_shape = jnp.broadcast_shapes(a.shape, b.shape, c.shape)
    dtype = jnp.result_type(a.dtype, b.dtype, c.dtype)

    # Match torch broadcasting / type-promotion semantics.
    # TODO(synk): broadcasting is materialized in the wrapper (extra HBM pass
    # for genuinely-broadcast c); an in-kernel broadcast would avoid it.
    a = jnp.broadcast_to(a.astype(dtype), out_shape)
    b = jnp.broadcast_to(b.astype(dtype), out_shape)
    c = jnp.broadcast_to(c.astype(dtype), out_shape)

    n = a.size
    itemsize = jnp.dtype(dtype).itemsize

    # Small-input fast path: launch + plumbing dominates; let XLA fuse it.
    if not force_pallas and n * itemsize < (1 << 20):
        return (b + c * (a - b)).astype(dtype)

    width = _pick_width(n)
    padded_n = _round_up(n, width)
    rows = padded_n // width

    # dtype-aware sublane granularity: 8 (f32) / 16 (bf16) / 32 (int8).
    sublane = max(8, 32 // max(1, itemsize))

    gen = _tpu_generation()
    tile_bytes = (4 << 20) if gen >= 7 else (2 << 20)   # per array per buffer
    vmem_limit = 48 << 20  # 4 arrays x 2 buffers x tile fits with headroom;
                           # above v5e's 16 MiB default, below v7x's 64 MiB.

    if rows <= sublane:
        tm = rows                      # block == full row extent (legal)
    else:
        tm_target = max(sublane,
                        (tile_bytes // (width * itemsize)) // sublane * sublane)
        # Keep the row grid split across TensorCores: >= ~8 steps on v7x
        # (2 TCs, each with its own HBM path), >= 2 elsewhere so the DMA
        # pipeline actually double-buffers.
        steps_goal = 8 if gen >= 7 else 2
        tm_cap = _round_up(pl.cdiv(rows, steps_goal), sublane)
        tm = max(sublane, min(tm_target, tm_cap))

    def to_slab(x):
        flat = x.reshape(-1)
        if padded_n != n:
            flat = jnp.pad(flat, (0, padded_n - n))
        return flat.reshape(rows, width)

    a2, b2, c2 = to_slab(a), to_slab(b), to_slab(c)

    grid = (pl.cdiv(rows, tm),)
    spec = pl.BlockSpec((tm, width), lambda i: (i, 0))

    out = pl.pallas_call(
        _blend_kernel,
        out_shape=jax.ShapeDtypeStruct((rows, width), dtype),
        grid=grid,
        in_specs=[spec, spec, spec],
        out_specs=spec,
        compiler_params=pltpu.CompilerParams(
            dimension_semantics=("parallel",),
            vmem_limit_bytes=vmem_limit),
        cost_estimate=pl.CostEstimate(
            flops=3 * padded_n,                         # sub + mul + add
            transcendentals=0,
            bytes_accessed=4 * padded_n * itemsize),    # 3 reads + 1 write
    )(a2, b2, c2)

    out_flat = out.reshape(-1)
    if padded_n != n:
        out_flat = out_flat[:n]
    return out_flat.reshape(out_shape)


if __name__ == "__main__":
    key = jax.random.PRNGKey(0)
    ka, kb, kc = jax.random.split(key, 3)

    def ref_blend(a, b, c):
        return a * c + b * (1.0 - c)

    # Case 1: small module-consistent shape, forced through the Pallas path.
    shape = (2, 4, 16, 16)
    a = jax.random.normal(ka, shape, dtype=jnp.float32)
    b = jax.random.normal(kb, shape, dtype=jnp.float32)
    c = jax.random.uniform(kc, shape, dtype=jnp.float32)
    y = jax.block_until_ready(blending_forward(a, b, c, force_pallas=True))
    assert y.shape == shape
    assert jnp.allclose(y, ref_blend(a, b, c), atol=1e-5, rtol=1e-5)

    # Case 2: ragged size -> exercises the width-128 + pad fallback path.
    shape2 = (5, 33, 130)
    a2 = jax.random.normal(ka, shape2, dtype=jnp.float32)
    b2 = jax.random.normal(kb, shape2, dtype=jnp.float32)
    c2 = jax.random.uniform(kc, shape2, dtype=jnp.float32)
    y2 = jax.block_until_ready(blending_forward(a2, b2, c2, force_pallas=True))
    assert y2.shape == shape2
    assert jnp.allclose(y2, ref_blend(a2, b2, c2), atol=1e-5, rtol=1e-5)

    # Case 3: broadcast blend weight (single-channel mask), small fast path.
    a3 = jax.random.normal(ka, (2, 4, 16, 16), dtype=jnp.float32)
    b3 = jax.random.normal(kb, (2, 4, 16, 16), dtype=jnp.float32)
    c3 = jax.random.uniform(kc, (2, 1, 16, 16), dtype=jnp.float32)
    y3 = jax.block_until_ready(blending_forward(a3, b3, c3))
    assert y3.shape == (2, 4, 16, 16)
    assert jnp.allclose(y3, ref_blend(a3, b3, c3), atol=1e-5, rtol=1e-5)

    # Case 4: multi-tile grid through the natural Pallas path (1 MiB, no pad).
    shape4 = (4, 8, 64, 128)
    a4 = jax.random.normal(ka, shape4, dtype=jnp.float32)
    b4 = jax.random.normal(kb, shape4, dtype=jnp.float32)
    c4 = jax.random.uniform(kc, shape4, dtype=jnp.float32)
    y4 = jax.block_until_ready(blending_forward(a4, b4, c4))
    assert y4.shape == shape4
    assert jnp.allclose(y4, ref_blend(a4, b4, c4), atol=1e-5, rtol=1e-5)

    print("KERNEL_OK")
</pallas_src>

<mosaic_0001>
module attributes {stable_mosaic.version = 11 : i64} {
  func.func @_blend_kernel(%arg0: i32, %arg1: memref<1x2048xf32, #tpu.memory_space<vmem>>, %arg2: memref<1x2048xf32, #tpu.memory_space<vmem>>, %arg3: memref<1x2048xf32, #tpu.memory_space<vmem>>, %arg4: memref<1x2048xf32, #tpu.memory_space<vmem>>) attributes {dimension_semantics = [#tpu.dimension_semantics<parallel>], iteration_bounds = array<i64: 1>, scalar_prefetch = 0 : i64, scratch_operands = 0 : i64, tpu.core_type = #tpu.core_type<tc>, window_params = [{transform_indices = @transform_0, window_bounds = array<i64: 1, 2048>}, {transform_indices = @transform_1, window_bounds = array<i64: 1, 2048>}, {transform_indices = @transform_2, window_bounds = array<i64: 1, 2048>}, {transform_indices = @transform_3, window_bounds = array<i64: 1, 2048>}]} {
    %c0 = arith.constant 0 : index
    %c0_0 = arith.constant 0 : index
    %0 = vector.load %arg1[%c0, %c0_0] : memref<1x2048xf32, #tpu.memory_space<vmem>>, vector<1x2048xf32>
    %c0_1 = arith.constant 0 : index
    %c0_2 = arith.constant 0 : index
    %1 = vector.load %arg2[%c0_1, %c0_2] : memref<1x2048xf32, #tpu.memory_space<vmem>>, vector<1x2048xf32>
    %c0_3 = arith.constant 0 : index
    %c0_4 = arith.constant 0 : index
    %2 = vector.load %arg3[%c0_3, %c0_4] : memref<1x2048xf32, #tpu.memory_space<vmem>>, vector<1x2048xf32>
    %3 = arith.subf %0, %1 : vector<1x2048xf32>
    %4 = arith.mulf %2, %3 : vector<1x2048xf32>
    %5 = arith.addf %1, %4 : vector<1x2048xf32>
    %c0_5 = arith.constant 0 : index
    %c0_6 = arith.constant 0 : index
    %6 = vector.load %arg4[%c0_5, %c0_6] : memref<1x2048xf32, #tpu.memory_space<vmem>>, vector<1x2048xf32>
    tpu.vector_store %arg4[%c0_5, %c0_6], %5 {strides = array<i32>} : memref<1x2048xf32, #tpu.memory_space<vmem>>, vector<1x2048xf32>,
    return
  }
  func.func @transform_0(%arg0: i32) -> (i32, i32) {
    %c0_i32 = arith.constant 0 : i32
    %c0_i32_0 = arith.constant 0 : i32
    return %arg0, %c0_i32 : i32, i32
  }
  func.func @transform_1(%arg0: i32) -> (i32, i32) {
    %c0_i32 = arith.constant 0 : i32
    %c0_i32_0 = arith.constant 0 : i32
    return %arg0, %c0_i32 : i32, i32
  }
  func.func @transform_2(%arg0: i32) -> (i32, i32) {
    %c0_i32 = arith.constant 0 : i32
    %c0_i32_0 = arith.constant 0 : i32
    return %arg0, %c0_i32 : i32, i32
  }
  func.func @transform_3(%arg0: i32) -> (i32, i32) {
    %c0_i32 = arith.constant 0 : i32
    %c0_i32_0 = arith.constant 0 : i32
    return %arg0, %c0_i32 : i32, i32
  }
}

</mosaic_0001>

<llo_original>
// kernel: tpu_custom_call.1
$region0: #{tpu_custom_call.1}
  #allocation0 [shape = 'u32[]', space=smem, size = 0x4, offset = 0x4, fixed_abs, tag = 'smem constant byte address 0x4 - core index']
  #allocation1 [shape = 'u32[144,128]{1,0:T(1,128)}', space=vmem, size = 0x12000, scoped, tag = 'internal scratch']
  %s0 = inlined_call_operand.hbm [shape: f32[1,2048], index: 0, kind: input, shape index: {}]
  %s1 = inlined_call_operand.hbm [shape: f32[1,2048], index: 1, kind: input, shape index: {}]
  %s2 = inlined_call_operand.hbm [shape: f32[1,2048], index: 2, kind: input, shape index: {}]
  %s3 = inlined_call_operand.hbm [shape: f32[1,2048], index: 3, kind: output, shape index: {}]
  %s4 = sld [smem:[#allocation0]]
  $region34: #{tpu_custom_call.1} parent=0
    _
  %s6 = ssub.s32 1, %s4
  %s7 = scalar_select 0, %s6, %s4
  $region1: #{tpu_custom_call.1} parent=0
    #allocation2 [shape = 'u8[8192]{0}', space=vmem, size = 0x2000, scoped, tag = 'input window, operand 0, single buffered']
    #allocation3 [shape = 's32[1]{0}', space=sflag, size = 0x4, scoped, tag = 'scoped memory for tpu_custom_call.1']
    #allocation4 [shape = 's32[1]{0}', space=sflag, size = 0x4, scoped, tag = 'scoped memory for tpu_custom_call.1']
    #allocation5 [shape = 'u8[8192]{0}', space=vmem, size = 0x2000, scoped, tag = 'input window, operand 1, single buffered']
    #allocation6 [shape = 's32[1]{0}', space=sflag, size = 0x4, scoped, tag = 'scoped memory for tpu_custom_call.1']
    #allocation7 [shape = 'u8[8192]{0}', space=vmem, size = 0x2000, scoped, tag = 'input window, operand 2, single buffered']
    #allocation8 [shape = 'u8[8192]{0}', space=vmem, size = 0x2000, scoped, tag = 'output window, operand 0, single buffered']
    %8 = vsyncpa [#allocation3], 0
    %9 = vsyncpa [#allocation6], 0
    %10 = vsyncpa [#allocation4], 0
    // Predicated region
    $region2: #{tpu_custom_call.1} parent=1 // pred_check
      _
    $region3: #{tpu_custom_call.1} parent=1 // pred_check_branch
      %12 = sbr.rel (0) target = $region5
    $region4: #{tpu_custom_call.1} parent=1 // pred_region
      %s14 = ssub.s32 256, 256
      %15 = vsyncadd [#allocation3], %s14
      %s17 = sshll.u32 [#allocation2], 4
      %s18 = int_to_ptr.vmem [resolvable:$true] %s17
      %20 = dma.hbm_to_vmem [thread:$0]  %s0, 256, %s18, [#allocation3]
    $region5: #{tpu_custom_call.1} parent=1 // pred_fallthru
      _
    // Predicated region
    $region6: #{tpu_custom_call.1} parent=1 // pred_check
      _
    $region7: #{tpu_custom_call.1} parent=1 // pred_check_branch
      %22 = sbr.rel (0) target = $region9
    $region8: #{tpu_custom_call.1} parent=1 // pred_region
      %s24 = ssub.s32 256, 256
      %25 = vsyncadd [#allocation6], %s24
      %s27 = sshll.u32 [#allocation5], 4
      %s28 = int_to_ptr.vmem [resolvable:$true] %s27
      %30 = dma.hbm_to_vmem [thread:$0]  %s1, 256, %s28, [#allocation6]
    $region9: #{tpu_custom_call.1} parent=1 // pred_fallthru
      _
    // Predicated region
    $region10: #{tpu_custom_call.1} parent=1 // pred_check
      _
    $region11: #{tpu_custom_call.1} parent=1 // pred_check_branch
      %32 = sbr.rel (0) target = $region13
    $region12: #{tpu_custom_call.1} parent=1 // pred_region
      %s34 = ssub.s32 256, 256
      %35 = vsyncadd [#allocation6], %s34
      %s37 = sshll.u32 [#allocation7], 4
      %s38 = int_to_ptr.vmem [resolvable:$true] %s37
      %40 = dma.hbm_to_vmem [thread:$0]  %s2, 256, %s38, [#allocation6]
    $region13: #{tpu_custom_call.1} parent=1 // pred_fallthru
      _
    // Predicated region
    $region14: #{tpu_custom_call.1} parent=1 // pred_check
      _
    $region15: #{tpu_custom_call.1} parent=1 // pred_check_branch
      %42 = sbr.rel (0) target = $region17
    $region16: #{tpu_custom_call.1} parent=1 // pred_region
      %43 = dma.done [#allocation3], 256
    $region17: #{tpu_custom_call.1} parent=1 // pred_fallthru
      _
    // Predicated region
    $region18: #{tpu_custom_call.1} parent=1 // pred_check
      _
    $region19: #{tpu_custom_call.1} parent=1 // pred_check_branch
      %45 = sbr.rel (0) target = $region21
    $region20: #{tpu_custom_call.1} parent=1 // pred_region
      %46 = dma.done [#allocation6], 256
    $region21: #{tpu_custom_call.1} parent=1 // pred_fallthru
      _
    // Predicated region
    $region22: #{tpu_custom_call.1} parent=1 // pred_check
      _
    $region23: #{tpu_custom_call.1} parent=1 // pred_check_branch
      %48 = sbr.rel (0) target = $region25
    $region24: #{tpu_custom_call.1} parent=1 // pred_region
      %49 = dma.done [#allocation6], 256
    $region25: #{tpu_custom_call.1} parent=1 // pred_fallthru
      _
    %v50 = vld [vmem:[#allocation2] sm:$0xff]
    %v51 = vld [vmem:[#allocation2 + $0x8] sm:$0xff]
    %v52 = vld [vmem:[#allocation5] sm:$0xff]
    %v53 = vld [vmem:[#allocation5 + $0x8] sm:$0xff]
    %v54 = vld [vmem:[#allocation7] sm:$0xff]
    %v55 = vld [vmem:[#allocation7 + $0x8] sm:$0xff]
    %v56 = vsub.f32 %v50, %v52
    %v57 = vsub.f32 %v51, %v53
    %v58 = vmul.f32 %v54, %v56
    %v59 = vmul.f32 %v55, %v57
    %v60 = vadd.f32 %v52, %v58
    %v61 = vadd.f32 %v53, %v59
    %62 = vst [vmem:[#allocation8] sm:$0xff] %v60
    %63 = vst [vmem:[#allocation8 + $0x8] sm:$0xff] %v61
    // Predicated region
    $region26: #{tpu_custom_call.1} parent=1 // pred_check
      _
    $region27: #{tpu_custom_call.1} parent=1 // pred_check_branch
      %65 = sbr.rel (0) target = $region29
    $region28: #{tpu_custom_call.1} parent=1 // pred_region
      %s67 = ssub.s32 256, 256
      %68 = vsyncadd [#allocation4], %s67
      %s70 = sshll.u32 [#allocation8], 4
      %s71 = int_to_ptr.vmem [resolvable:$true] %s70
      %73 = dma.vmem_to_hbm [thread:$0]  %s71, 256, %s3, [#allocation4]
    $region29: #{tpu_custom_call.1} parent=1 // pred_fallthru
      _
    // Predicated region
    $region30: #{tpu_custom_call.1} parent=1 // pred_check
      _
    $region31: #{tpu_custom_call.1} parent=1 // pred_check_branch
      %75 = sbr.rel (0) target = $region33
    $region32: #{tpu_custom_call.1} parent=1 // pred_region
      %76 = dma.done [#allocation4], 256
    $region33: #{tpu_custom_call.1} parent=1 // pred_fallthru
      _
    %77 = vsyncpa [#allocation3], 1
    %78 = vsyncpa [#allocation6], 1
    %79 = vsyncpa [#allocation4], 1

</llo_original>
